<compile_context>
chip_gen: v7x
topology: tpu7x:2x2x1
jax: 0.10.0
libtpu: 0.0.40
codegen_flags: <defaults>
</compile_context>

<pallas_src>
import functools

import jax
import jax.numpy as jnp
from jax import lax
from jax.experimental import pallas as pl
from jax.experimental.pallas import tpu as pltpu

EPS = 1e-5


# ---------------------------------------------------------------------------
# Pass 1: depthwise 3x3 conv (stride, padding=1) + BN1 batch statistics.
# Grid: (N,)  -- "arbitrary" (stats accumulator is revisited every step).
# ---------------------------------------------------------------------------
def _dw_kernel(x_ref, wd_ref, dw_ref, stats_ref, xp_s, *, cin, h, w, stride):
    # x_ref:     (1, Cin, H, W)     one batch element, NCHW consumed directly
    # wd_ref:    (Cin, 1, 9)        depthwise taps, tap index k = ky*3 + kx
    # dw_ref:    (Cin, 1, Ho, Wo)   channel-major output block
    # stats_ref: (Cin, 2)           [sum, sumsq] accumulated over the batch axis
    # xp_s:      (Cin, H+2, W+2)    VMEM scratch: zero-padded input (pad on-chip)
    n = pl.program_id(0)

    @pl.when(n == 0)
    def _():
        stats_ref[...] = jnp.zeros_like(stats_ref)
        # Zero the padded scratch once; only the 1-pixel border must be zero
        # and the border is never written afterwards, so later batch steps can
        # skip the memset and just overwrite the interior.
        xp_s[...] = jnp.zeros_like(xp_s)

    xp_s[:, 1:h + 1, 1:w + 1] = x_ref[0].astype(jnp.float32)

    # 9 contiguous shifted FMAs (no strided patch slicing).
    acc = jnp.zeros((cin, h, w), jnp.float32)
    for ky in range(3):
        for kx in range(3):
            k = ky * 3 + kx
            tap = wd_ref[:, :, k:k + 1]                     # (Cin, 1, 1)
            acc = acc + xp_s[:, ky:ky + h, kx:kx + w] * tap

    if stride > 1:
        # Stride handled by subsampling after accumulation; the depthwise FMA
        # work is tiny so the redundant rows/cols are cheap.
        out = acc[:, ::stride, ::stride]
    else:
        out = acc

    dw_ref[:, 0, :, :] = out

    # Per-channel partial statistics (last-axis reductions only).
    psum = jnp.sum(jnp.sum(out, axis=2), axis=1, keepdims=True)          # (Cin,1)
    psq = jnp.sum(jnp.sum(out * out, axis=2), axis=1, keepdims=True)     # (Cin,1)
    stats_ref[:, 0:1] += psum
    stats_ref[:, 1:2] += psq


# ---------------------------------------------------------------------------
# Pass 2: BN1 affine + ReLU + pointwise 1x1 conv + BN2 batch statistics.
# Grid: (M // Mt,) over lane-dense tiles of M = N*Ho*Wo  -- "arbitrary".
# ---------------------------------------------------------------------------
def _pw_kernel(dw_ref, scale1_ref, shift1_ref, wp_ref, y_ref, stats_ref, *,
               cin, cout, mt):
    # dw_ref: (Cin, Mt) lane-dense; scale/shift: (Cin,1); wp_ref: (Cout, Cin)
    # y_ref:  (Cout, Mt) lane-dense; stats_ref: (Cout, 2) accumulator
    @pl.when(pl.program_id(0) == 0)
    def _():
        stats_ref[...] = jnp.zeros_like(stats_ref)

    h = jnp.maximum(dw_ref[...] * scale1_ref[...] + shift1_ref[...], 0.0)

    wp = wp_ref[...].astype(jnp.float32)
    if cin >= 128:
        # Real MobileNet channel counts: full-width bf16 MXU matmul.
        y = jnp.dot(wp.astype(jnp.bfloat16), h.astype(jnp.bfloat16),
                    preferred_element_type=jnp.float32)
    else:
        # Tiny Cin: 1x1 conv as a VPU multiply-accumulate (MXU would be <1%
        # utilized for K=Cin=4).
        y = jnp.zeros((cout, mt), jnp.float32)
        for ci in range(cin):
            y = y + wp[:, ci:ci + 1] * h[ci:ci + 1, :]

    y_ref[...] = y
    stats_ref[:, 0:1] += jnp.sum(y, axis=1, keepdims=True)
    stats_ref[:, 1:2] += jnp.sum(y * y, axis=1, keepdims=True)


# ---------------------------------------------------------------------------
# Pass 3: BN2 affine + ReLU.  Grid over lane tiles, "parallel" (megacore).
# ---------------------------------------------------------------------------
def _bn2_kernel(y_ref, scale2_ref, shift2_ref, o_ref):
    o_ref[...] = jnp.maximum(
        y_ref[...] * scale2_ref[...] + shift2_ref[...], 0.0).astype(o_ref.dtype)


def _pick_lane_tile(m, cin, cout):
    """Largest power-of-two lane tile (128..cap) dividing M; else full M.

    A full-extent block is always legal (block == full array dim), so odd M
    falls back to a single-step grid.  The cap keeps double-buffered in/out
    blocks comfortably inside the 32 MiB scoped VMEM budget (v7x has only
    64 MiB physical per TensorCore).
    """
    per_col_bytes = (cin + 2 * cout) * 4 * 2          # in+out blocks, 2 buffers
    cap = max(128, min(8192, ((8 << 20) // max(per_col_bytes, 1)) // 128 * 128))
    best = m
    cand = 128
    while cand <= min(m, cap):
        if m % cand == 0:
            best = cand
        cand *= 2
    return best


def block_forward(x_nchw, wd_t, wp_t, g1, b1, g2, b2, stride):
    """x_nchw: (N, Cin, H, W); wd_t: (Cin,1,3,3); wp_t: (Cout,Cin,1,1)."""
    n, cin, h, w = x_nchw.shape
    cout = wp_t.shape[0]
    ho = (h + 2 - 3) // stride + 1
    wo = (w + 2 - 3) // stride + 1
    m = n * ho * wo

    # Tiny parameter reshapes only (no activation-sized wrapper HBM traffic).
    wd_taps = wd_t[:, 0].reshape(cin, 1, 9)           # (Cin, 1, 9), k = ky*3+kx
    wp = wp_t[:, :, 0, 0]                             # (Cout, Cin)

    cparams_arb = pltpu.CompilerParams(
        dimension_semantics=("arbitrary",), vmem_limit_bytes=32 * 1024 * 1024)
    cparams_par = pltpu.CompilerParams(
        dimension_semantics=("parallel",), vmem_limit_bytes=32 * 1024 * 1024)

    # ---- pass 1: depthwise conv + BN1 stats -------------------------------
    dw, stats1 = pl.pallas_call(
        functools.partial(_dw_kernel, cin=cin, h=h, w=w, stride=stride),
        grid=(n,),
        in_specs=[
            pl.BlockSpec((1, cin, h, w), lambda i: (i, 0, 0, 0)),
            pl.BlockSpec((cin, 1, 9), lambda i: (0, 0, 0)),
        ],
        out_specs=(
            pl.BlockSpec((cin, 1, ho, wo), lambda i: (0, i, 0, 0)),
            pl.BlockSpec((cin, 2), lambda i: (0, 0)),
        ),
        out_shape=(
            jax.ShapeDtypeStruct((cin, n, ho, wo), jnp.float32),
            jax.ShapeDtypeStruct((cin, 2), jnp.float32),
        ),
        scratch_shapes=[pltpu.VMEM((cin, h + 2, w + 2), jnp.float32)],
        compiler_params=cparams_arb,
    )(x_nchw, wd_taps)

    mean1 = stats1[:, 0] / m
    var1 = jnp.maximum(stats1[:, 1] / m - mean1 * mean1, 0.0)
    scale1 = g1 * lax.rsqrt(var1 + EPS)
    shift1 = b1 - mean1 * scale1

    # ---- pass 2: BN1 + ReLU + 1x1 conv + BN2 stats -------------------------
    dw2 = dw.reshape(cin, m)                          # contiguous (free) reshape
    mt = _pick_lane_tile(m, cin, cout)
    y, stats2 = pl.pallas_call(
        functools.partial(_pw_kernel, cin=cin, cout=cout, mt=mt),
        grid=(m // mt,),
        in_specs=[
            pl.BlockSpec((cin, mt), lambda i: (0, i)),
            pl.BlockSpec((cin, 1), lambda i: (0, 0)),
            pl.BlockSpec((cin, 1), lambda i: (0, 0)),
            pl.BlockSpec((cout, cin), lambda i: (0, 0)),
        ],
        out_specs=(
            pl.BlockSpec((cout, mt), lambda i: (0, i)),
            pl.BlockSpec((cout, 2), lambda i: (0, 0)),
        ),
        out_shape=(
            jax.ShapeDtypeStruct((cout, m), jnp.float32),
            jax.ShapeDtypeStruct((cout, 2), jnp.float32),
        ),
        compiler_params=cparams_arb,
    )(dw2, scale1[:, None], shift1[:, None], wp)

    mean2 = stats2[:, 0] / m
    var2 = jnp.maximum(stats2[:, 1] / m - mean2 * mean2, 0.0)
    scale2 = g2 * lax.rsqrt(var2 + EPS)
    shift2 = b2 - mean2 * scale2

    # ---- pass 3: BN2 + ReLU (lane-dense stores, parallel grid) -------------
    z = pl.pallas_call(
        _bn2_kernel,
        grid=(m // mt,),
        in_specs=[
            pl.BlockSpec((cout, mt), lambda i: (0, i)),
            pl.BlockSpec((cout, 1), lambda i: (0, 0)),
            pl.BlockSpec((cout, 1), lambda i: (0, 0)),
        ],
        out_specs=pl.BlockSpec((cout, mt), lambda i: (0, i)),
        out_shape=jax.ShapeDtypeStruct((cout, m), jnp.float32),
        compiler_params=cparams_par,
    )(y, scale2[:, None], shift2[:, None])

    # Back to torch NCHW at the module boundary.
    # TODO(synk): a chained MobileNet would keep the channel-major (C, M)
    # layout between Blocks and skip this transpose entirely.
    return jnp.transpose(z.reshape(cout, n, ho, wo), (1, 0, 2, 3))


def block_forward_ref(x, wd_t, wp_t, g1, b1, g2, b2, stride):
    """Pure-JAX reference matching torch (training-mode BN, biased variance)."""
    cin = x.shape[1]
    dw = lax.conv_general_dilated(
        x, wd_t, window_strides=(stride, stride), padding=((1, 1), (1, 1)),
        dimension_numbers=('NCHW', 'OIHW', 'NCHW'), feature_group_count=cin)
    mean1 = jnp.mean(dw, axis=(0, 2, 3), keepdims=True)
    var1 = jnp.mean((dw - mean1) ** 2, axis=(0, 2, 3), keepdims=True)
    h = (dw - mean1) * lax.rsqrt(var1 + EPS)
    h = h * g1[None, :, None, None] + b1[None, :, None, None]
    h = jnp.maximum(h, 0.0)
    pw = lax.conv_general_dilated(
        h, wp_t, window_strides=(1, 1), padding=((0, 0), (0, 0)),
        dimension_numbers=('NCHW', 'OIHW', 'NCHW'))
    mean2 = jnp.mean(pw, axis=(0, 2, 3), keepdims=True)
    var2 = jnp.mean((pw - mean2) ** 2, axis=(0, 2, 3), keepdims=True)
    z = (pw - mean2) * lax.rsqrt(var2 + EPS)
    z = z * g2[None, :, None, None] + b2[None, :, None, None]
    return jnp.maximum(z, 0.0)


if __name__ == "__main__":
    N, C_IN, C_OUT, H, W, STRIDE = 2, 4, 8, 16, 16, 1

    key = jax.random.PRNGKey(0)
    kx, kd, kp, kg1, kb1, kg2, kb2 = jax.random.split(key, 7)

    x = jax.random.normal(kx, (N, C_IN, H, W), jnp.float32)
    wd_t = jax.random.normal(kd, (C_IN, 1, 3, 3), jnp.float32) * 0.3
    wp_t = jax.random.normal(kp, (C_OUT, C_IN, 1, 1), jnp.float32) * 0.3
    g1 = 1.0 + 0.1 * jax.random.normal(kg1, (C_IN,), jnp.float32)
    b1 = 0.1 * jax.random.normal(kb1, (C_IN,), jnp.float32)
    g2 = 1.0 + 0.1 * jax.random.normal(kg2, (C_OUT,), jnp.float32)
    b2 = 0.1 * jax.random.normal(kb2, (C_OUT,), jnp.float32)

    out = block_forward(x, wd_t, wp_t, g1, b1, g2, b2, STRIDE)
    out = jax.block_until_ready(out)

    ref = jax.block_until_ready(
        block_forward_ref(x, wd_t, wp_t, g1, b1, g2, b2, STRIDE))

    assert out.shape == (N, C_OUT, H // STRIDE, W // STRIDE)
    assert jnp.max(jnp.abs(out - ref)) < 1e-4

    print("KERNEL_OK")
</pallas_src>

<mosaic_0001>
module attributes {stable_mosaic.version = 11 : i64} {
  func.func @_dw_kernel(%arg0: i32, %arg1: memref<1x4x16x16xf32, #tpu.memory_space<vmem>>, %arg2: memref<4x1x9xf32, #tpu.memory_space<vmem>>, %arg3: memref<4x1x16x16xf32, #tpu.memory_space<vmem>>, %arg4: memref<4x2xf32, #tpu.memory_space<vmem>>, %arg5: memref<4x18x18xf32, #tpu.memory_space<vmem>>) attributes {dimension_semantics = [#tpu.dimension_semantics<arbitrary>], iteration_bounds = array<i64: 2>, scalar_prefetch = 0 : i64, scratch_operands = 1 : i64, tpu.core_type = #tpu.core_type<tc>, window_params = [{transform_indices = @transform_0, window_bounds = array<i64: 1, 4, 16, 16>}, {pipeline_mode = #tpu.pipeline_mode<synchronous>, transform_indices = @transform_1, window_bounds = array<i64: 4, 1, 9>}, {transform_indices = @transform_2, window_bounds = array<i64: 4, 1, 16, 16>}, {pipeline_mode = #tpu.pipeline_mode<synchronous>, transform_indices = @transform_3, window_bounds = array<i64: 4, 2>}]} {
    %c0_i32 = arith.constant 0 : i32
    %0 = arith.cmpi eq, %arg0, %c0_i32 : i32
    %1 = arith.extui %0 : i1 to i32
    %c0_i32_0 = arith.constant 0 : i32
    %2 = arith.cmpi ne, %1, %c0_i32_0 : i32
    scf.if %2 {
      %cst_69 = arith.constant 0.000000e+00 : f32
      %68 = vector.broadcast %cst_69 : f32 to vector<4x2xf32>
      %c0_70 = arith.constant 0 : index
      %c0_71 = arith.constant 0 : index
      %69 = vector.load %arg4[%c0_70, %c0_71] : memref<4x2xf32, #tpu.memory_space<vmem>>, vector<4x2xf32>
      tpu.vector_store %arg4[%c0_70, %c0_71], %68 {strides = array<i32>} : memref<4x2xf32, #tpu.memory_space<vmem>>, vector<4x2xf32>,
      %cst_72 = arith.constant 0.000000e+00 : f32
      %70 = vector.broadcast %cst_72 : f32 to vector<4x18x18xf32>
      %c0_73 = arith.constant 0 : index
      %c0_74 = arith.constant 0 : index
      %c0_75 = arith.constant 0 : index
      %71 = vector.load %arg5[%c0_73, %c0_74, %c0_75] : memref<4x18x18xf32, #tpu.memory_space<vmem>>, vector<4x18x18xf32>
      tpu.vector_store %arg5[%c0_73, %c0_74, %c0_75], %70 {strides = array<i32>} : memref<4x18x18xf32, #tpu.memory_space<vmem>>, vector<4x18x18xf32>,
    } else {
    }
    %c0 = arith.constant 0 : index
    %c0_1 = arith.constant 0 : index
    %c0_2 = arith.constant 0 : index
    %c0_3 = arith.constant 0 : index
    %3 = vector.load %arg1[%c0, %c0_1, %c0_2, %c0_3] : memref<1x4x16x16xf32, #tpu.memory_space<vmem>>, vector<1x4x16x16xf32>
    %4 = vector.shape_cast %3 : vector<1x4x16x16xf32> to vector<4x16x16xf32>
    %c0_4 = arith.constant 0 : index
    %c1 = arith.constant 1 : index
    %c1_5 = arith.constant 1 : index
    %5 = vector.load %arg5[%c0_4, %c1, %c1_5] : memref<4x18x18xf32, #tpu.memory_space<vmem>>, vector<4x16x16xf32>
    tpu.vector_store %arg5[%c0_4, %c1, %c1_5], %4 {strides = array<i32>} : memref<4x18x18xf32, #tpu.memory_space<vmem>>, vector<4x16x16xf32>,
    %cst = arith.constant 0.000000e+00 : f32
    %6 = vector.broadcast %cst : f32 to vector<4x16x16xf32>
    %c0_6 = arith.constant 0 : index
    %c0_7 = arith.constant 0 : index
    %c0_8 = arith.constant 0 : index
    %7 = vector.load %arg2[%c0_6, %c0_7, %c0_8] : memref<4x1x9xf32, #tpu.memory_space<vmem>>, vector<4x1x1xf32>
    %c0_9 = arith.constant 0 : index
    %c0_10 = arith.constant 0 : index
    %c0_11 = arith.constant 0 : index
    %8 = vector.load %arg5[%c0_9, %c0_10, %c0_11] : memref<4x18x18xf32, #tpu.memory_space<vmem>>, vector<4x16x16xf32>
    %9 = vector.broadcast %7 : vector<4x1x1xf32> to vector<4x16x16xf32>
    %10 = arith.mulf %8, %9 : vector<4x16x16xf32>
    %11 = arith.addf %6, %10 : vector<4x16x16xf32>
    %c0_12 = arith.constant 0 : index
    %c0_13 = arith.constant 0 : index
    %c1_14 = arith.constant 1 : index
    %12 = vector.load %arg2[%c0_12, %c0_13, %c1_14] : memref<4x1x9xf32, #tpu.memory_space<vmem>>, vector<4x1x1xf32>
    %c0_15 = arith.constant 0 : index
    %c0_16 = arith.constant 0 : index
    %c1_17 = arith.constant 1 : index
    %13 = vector.load %arg5[%c0_15, %c0_16, %c1_17] : memref<4x18x18xf32, #tpu.memory_space<vmem>>, vector<4x16x16xf32>
    %14 = vector.broadcast %12 : vector<4x1x1xf32> to vector<4x16x16xf32>
    %15 = arith.mulf %13, %14 : vector<4x16x16xf32>
    %16 = arith.addf %11, %15 : vector<4x16x16xf32>
    %c0_18 = arith.constant 0 : index
    %c0_19 = arith.constant 0 : index
    %c2 = arith.constant 2 : index
    %17 = vector.load %arg2[%c0_18, %c0_19, %c2] : memref<4x1x9xf32, #tpu.memory_space<vmem>>, vector<4x1x1xf32>
    %c0_20 = arith.constant 0 : index
    %c0_21 = arith.constant 0 : index
    %c2_22 = arith.constant 2 : index
    %18 = vector.load %arg5[%c0_20, %c0_21, %c2_22] : memref<4x18x18xf32, #tpu.memory_space<vmem>>, vector<4x16x16xf32>
    %19 = vector.broadcast %17 : vector<4x1x1xf32> to vector<4x16x16xf32>
    %20 = arith.mulf %18, %19 : vector<4x16x16xf32>
    %21 = arith.addf %16, %20 : vector<4x16x16xf32>
    %c0_23 = arith.constant 0 : index
    %c0_24 = arith.constant 0 : index
    %c3 = arith.constant 3 : index
    %22 = vector.load %arg2[%c0_23, %c0_24, %c3] : memref<4x1x9xf32, #tpu.memory_space<vmem>>, vector<4x1x1xf32>
    %c0_25 = arith.constant 0 : index
    %c1_26 = arith.constant 1 : index
    %c0_27 = arith.constant 0 : index
    %23 = vector.load %arg5[%c0_25, %c1_26, %c0_27] : memref<4x18x18xf32, #tpu.memory_space<vmem>>, vector<4x16x16xf32>
    %24 = vector.broadcast %22 : vector<4x1x1xf32> to vector<4x16x16xf32>
    %25 = arith.mulf %23, %24 : vector<4x16x16xf32>
    %26 = arith.addf %21, %25 : vector<4x16x16xf32>
    %c0_28 = arith.constant 0 : index
    %c0_29 = arith.constant 0 : index
    %c4 = arith.constant 4 : index
    %27 = vector.load %arg2[%c0_28, %c0_29, %c4] : memref<4x1x9xf32, #tpu.memory_space<vmem>>, vector<4x1x1xf32>
    %c0_30 = arith.constant 0 : index
    %c1_31 = arith.constant 1 : index
    %c1_32 = arith.constant 1 : index
    %28 = vector.load %arg5[%c0_30, %c1_31, %c1_32] : memref<4x18x18xf32, #tpu.memory_space<vmem>>, vector<4x16x16xf32>
    %29 = vector.broadcast %27 : vector<4x1x1xf32> to vector<4x16x16xf32>
    %30 = arith.mulf %28, %29 : vector<4x16x16xf32>
    %31 = arith.addf %26, %30 : vector<4x16x16xf32>
    %c0_33 = arith.constant 0 : index
    %c0_34 = arith.constant 0 : index
    %c5 = arith.constant 5 : index
    %32 = vector.load %arg2[%c0_33, %c0_34, %c5] : memref<4x1x9xf32, #tpu.memory_space<vmem>>, vector<4x1x1xf32>
    %c0_35 = arith.constant 0 : index
    %c1_36 = arith.constant 1 : index
    %c2_37 = arith.constant 2 : index
    %33 = vector.load %arg5[%c0_35, %c1_36, %c2_37] : memref<4x18x18xf32, #tpu.memory_space<vmem>>, vector<4x16x16xf32>
    %34 = vector.broadcast %32 : vector<4x1x1xf32> to vector<4x16x16xf32>
    %35 = arith.mulf %33, %34 : vector<4x16x16xf32>
    %36 = arith.addf %31, %35 : vector<4x16x16xf32>
    %c0_38 = arith.constant 0 : index
    %c0_39 = arith.constant 0 : index
    %c6 = arith.constant 6 : index
    %37 = vector.load %arg2[%c0_38, %c0_39, %c6] : memref<4x1x9xf32, #tpu.memory_space<vmem>>, vector<4x1x1xf32>
    %c0_40 = arith.constant 0 : index
    %c2_41 = arith.constant 2 : index
    %c0_42 = arith.constant 0 : index
    %38 = vector.load %arg5[%c0_40, %c2_41, %c0_42] : memref<4x18x18xf32, #tpu.memory_space<vmem>>, vector<4x16x16xf32>
    %39 = vector.broadcast %37 : vector<4x1x1xf32> to vector<4x16x16xf32>
    %40 = arith.mulf %38, %39 : vector<4x16x16xf32>
    %41 = arith.addf %36, %40 : vector<4x16x16xf32>
    %c0_43 = arith.constant 0 : index
    %c0_44 = arith.constant 0 : index
    %c7 = arith.constant 7 : index
    %42 = vector.load %arg2[%c0_43, %c0_44, %c7] : memref<4x1x9xf32, #tpu.memory_space<vmem>>, vector<4x1x1xf32>
    %c0_45 = arith.constant 0 : index
    %c2_46 = arith.constant 2 : index
    %c1_47 = arith.constant 1 : index
    %43 = vector.load %arg5[%c0_45, %c2_46, %c1_47] : memref<4x18x18xf32, #tpu.memory_space<vmem>>, vector<4x16x16xf32>
    %44 = vector.broadcast %42 : vector<4x1x1xf32> to vector<4x16x16xf32>
    %45 = arith.mulf %43, %44 : vector<4x16x16xf32>
    %46 = arith.addf %41, %45 : vector<4x16x16xf32>
    %c0_48 = arith.constant 0 : index
    %c0_49 = arith.constant 0 : index
    %c8 = arith.constant 8 : index
    %47 = vector.load %arg2[%c0_48, %c0_49, %c8] : memref<4x1x9xf32, #tpu.memory_space<vmem>>, vector<4x1x1xf32>
    %c0_50 = arith.constant 0 : index
    %c2_51 = arith.constant 2 : index
    %c2_52 = arith.constant 2 : index
    %48 = vector.load %arg5[%c0_50, %c2_51, %c2_52] : memref<4x18x18xf32, #tpu.memory_space<vmem>>, vector<4x16x16xf32>
    %49 = vector.broadcast %47 : vector<4x1x1xf32> to vector<4x16x16xf32>
    %50 = arith.mulf %48, %49 : vector<4x16x16xf32>
    %51 = arith.addf %46, %50 : vector<4x16x16xf32>
    %c0_53 = arith.constant 0 : index
    %c0_54 = arith.constant 0 : index
    %c0_55 = arith.constant 0 : index
    %c0_56 = arith.constant 0 : index
    %52 = vector.load %arg3[%c0_53, %c0_54, %c0_55, %c0_56] : memref<4x1x16x16xf32, #tpu.memory_space<vmem>>, vector<4x1x16x16xf32>
    %53 = vector.shape_cast %52 : vector<4x1x16x16xf32> to vector<4x16x16xf32>
    %54 = vector.shape_cast %51 : vector<4x16x16xf32> to vector<4x1x16x16xf32>
    tpu.vector_store %arg3[%c0_53, %c0_54, %c0_55, %c0_56], %54 {strides = array<i32>} : memref<4x1x16x16xf32, #tpu.memory_space<vmem>>, vector<4x1x16x16xf32>,
    %cst_57 = arith.constant dense<0.000000e+00> : vector<4x16xf32>
    %55 = vector.multi_reduction <add>, %51, %cst_57 [2] : vector<4x16x16xf32> to vector<4x16xf32>
    %cst_58 = arith.constant dense<0.000000e+00> : vector<4xf32>
    %56 = vector.multi_reduction <add>, %55, %cst_58 [1] : vector<4x16xf32> to vector<4xf32>
    %57 = vector.shape_cast %56 : vector<4xf32> to vector<4x1xf32>
    %58 = arith.mulf %51, %51 : vector<4x16x16xf32>
    %cst_59 = arith.constant dense<0.000000e+00> : vector<4x16xf32>
    %59 = vector.multi_reduction <add>, %58, %cst_59 [2] : vector<4x16x16xf32> to vector<4x16xf32>
    %cst_60 = arith.constant dense<0.000000e+00> : vector<4xf32>
    %60 = vector.multi_reduction <add>, %59, %cst_60 [1] : vector<4x16xf32> to vector<4xf32>
    %61 = vector.shape_cast %60 : vector<4xf32> to vector<4x1xf32>
    %c0_61 = arith.constant 0 : index
    %c0_62 = arith.constant 0 : index
    %62 = vector.load %arg4[%c0_61, %c0_62] : memref<4x2xf32, #tpu.memory_space<vmem>>, vector<4x1xf32>
    %63 = arith.addf %62, %57 : vector<4x1xf32>
    %c0_63 = arith.constant 0 : index
    %c0_64 = arith.constant 0 : index
    %64 = vector.load %arg4[%c0_63, %c0_64] : memref<4x2xf32, #tpu.memory_space<vmem>>, vector<4x1xf32>
    tpu.vector_store %arg4[%c0_63, %c0_64], %63 {strides = array<i32>} : memref<4x2xf32, #tpu.memory_space<vmem>>, vector<4x1xf32>,
    %c0_65 = arith.constant 0 : index
    %c1_66 = arith.constant 1 : index
    %65 = vector.load %arg4[%c0_65, %c1_66] : memref<4x2xf32, #tpu.memory_space<vmem>>, vector<4x1xf32>
    %66 = arith.addf %65, %61 : vector<4x1xf32>
    %c0_67 = arith.constant 0 : index
    %c1_68 = arith.constant 1 : index
    %67 = vector.load %arg4[%c0_67, %c1_68] : memref<4x2xf32, #tpu.memory_space<vmem>>, vector<4x1xf32>
    tpu.vector_store %arg4[%c0_67, %c1_68], %66 {strides = array<i32>} : memref<4x2xf32, #tpu.memory_space<vmem>>, vector<4x1xf32>,
    return
  }
  func.func @transform_0(%arg0: i32) -> (i32, i32, i32, i32) {
    %c0_i32 = arith.constant 0 : i32
    %c0_i32_0 = arith.constant 0 : i32
    %c0_i32_1 = arith.constant 0 : i32
    %c0_i32_2 = arith.constant 0 : i32
    return %arg0, %c0_i32, %c0_i32_0, %c0_i32_1 : i32, i32, i32, i32
  }
  func.func @transform_1(%arg0: i32) -> (i32, i32, i32) {
    %c0_i32 = arith.constant 0 : i32
    %c0_i32_0 = arith.constant 0 : i32
    %c0_i32_1 = arith.constant 0 : i32
    %c0_i32_2 = arith.constant 0 : i32
    return %c0_i32, %c0_i32_0, %c0_i32_1 : i32, i32, i32
  }
  func.func @transform_2(%arg0: i32) -> (i32, i32, i32, i32) {
    %c0_i32 = arith.constant 0 : i32
    %c0_i32_0 = arith.constant 0 : i32
    %c0_i32_1 = arith.constant 0 : i32
    %c0_i32_2 = arith.constant 0 : i32
    return %c0_i32, %arg0, %c0_i32_0, %c0_i32_1 : i32, i32, i32, i32
  }
  func.func @transform_3(%arg0: i32) -> (i32, i32) {
    %c0_i32 = arith.constant 0 : i32
    %c0_i32_0 = arith.constant 0 : i32
    %c0_i32_1 = arith.constant 0 : i32
    return %c0_i32, %c0_i32_0 : i32, i32
  }
}

</mosaic_0001>

<llo_original>
// kernel: tpu_custom_call.1
$region0: #{tpu_custom_call.1}
  #allocation0 [shape = 'u32[]', space=smem, size = 0x4, offset = 0x4, fixed_abs, tag = 'smem constant byte address 0x4 - core index']
  #allocation1 [shape = 'u32[144,128]{1,0:T(1,128)}', space=vmem, size = 0x12000, scoped, tag = 'internal scratch']
  #allocation2 [shape = 'f32[4,18,18]{2,1,0:T(8,128)}', space=vmem, size = 0xc000, scoped, tag = 'scratch operand']
  #allocation9 [shape = 's32[]', space=sflag, size = 0x4, offset = 0, fixed_abs, tag = 'sflag constant byte address 0x0 - dummy sync flag']
  %s0 = inlined_call_operand.hbm [shape: f32[2,4,16,16], index: 0, kind: input, shape index: {}]
  %s1 = inlined_call_operand.hbm [shape: f32[4,1,9], index: 1, kind: input, shape index: {}]
  %s2 = inlined_call_operand.hbm [shape: f32[4,2,16,16], index: 2, kind: output, shape index: {0}]
  %s3 = inlined_call_operand.vmem [shape: f32[4,2], index: 3, kind: output, shape index: {1}]
  %4 = xla_tuple %s2, %s3
  %s5 = sld [smem:[#allocation0]]
  $region61: #{tpu_custom_call.1} parent=0
    _
  %s7 = ssub.s32 1, %s5
  %s8 = scalar_select 0, %s7, %s5
  $region1: #{tpu_custom_call.1} parent=0
    #allocation3 [shape = 'u8[65536]{0}', space=vmem, size = 0x10000, scoped, tag = 'input window, operand 0']
    #allocation4 [shape = 's32[2]{0}', space=sflag, size = 0x8, scoped, tag = 'scoped memory for tpu_custom_call.1']
    #allocation5 [shape = 's32[2]{0}', space=sflag, size = 0x8, scoped, tag = 'scoped memory for tpu_custom_call.1']
    #allocation6 [shape = 'u8[2048]{0}', space=vmem, size = 0x800, scoped, tag = 'input window, operand 1, single buffered']
    #allocation7 [shape = 's32[1]{0}', space=sflag, size = 0x4, scoped, tag = 'scoped memory for tpu_custom_call.1']
    #allocation8 [shape = 'u8[65536]{0}', space=vmem, size = 0x10000, scoped, tag = 'output window, operand 0']
    %9 = vsyncpa [#allocation4], 0
    %s10 = scalar_lea.sflag [#allocation4], 1
    %11 = vsyncpa %s10, 0
    %12 = vsyncpa [#allocation7], 0
    %13 = vsyncpa [#allocation5], 0
    %s14 = scalar_lea.sflag [#allocation5], 1
    %15 = vsyncpa %s14, 0
    loop: start=0, step=1, limit=4
    $region2: #{tpu_custom_call.1} parent=1 // loop_pre_header
      _
    $region3: #{tpu_custom_call.1} parent=1 // loop_header
      %s17 = sphi 0, %s21
      %p18 = scmp.ge.s32.totalorder %s17, 4
      %s27 = sphi 0, %s29
      %s30 = sphi 0, %s27
      %s31 = sphi 0, %s30
      %s47 = sphi 0, %s31
      %s51 = sphi 0, %s51
      %s53 = sphi 0, %s51
      %s54 = sphi 0, %s53
      %s68 = sphi 0, %s54
      %s74 = sphi 0, %s76
      %s77 = sphi 0, %s74
      %s78 = sphi 0, %s77
      %s94 = sphi 0, %s78
      %s98 = sphi 0, %s98
      %s100 = sphi 0, %s98
      %s101 = sphi 0, %s100
      %s115 = sphi 0, %s101
    $region4: #{tpu_custom_call.1} parent=1 // loop_header_branch
      %20 = sbr.rel (%p18) target = $region8
    $region5: #{tpu_custom_call.1} parent=1 // loop_body
      %s22 = ssub.s32 %s17, 1
      %s23 = ssub.s32 %s17, 2
      %s24 = sadd.s32 %s17, 1
      %s25 = ssub.s32 %s17, %s24
      %p26 = scmp.eq.s32.totalorder %s25, 0
      %s28 = sadd.s32 %s27, 1
      %s29 = scalar_select %p26, %s27, %s28
      %p32 = pneg %p26
      %p33 = scmp.eq.s32.totalorder %s17, 1
      %p34 = por %p32, %p33
      %p35 = scmp.ne.s32.totalorder %s27, %s30
      %p36 = scmp.eq.s32.totalorder %s17, 0
      %p37 = por %p35, %p36
      %p38 = scmp.ne.s32.totalorder %s27, %s30
      %p39 = scmp.eq.s32.totalorder %s22, 1
      %p40 = por %p38, %p39
      %p41 = scmp.ne.s32.totalorder %s30, %s31
      %p42 = scmp.eq.s32.totalorder %s22, 0
      %p43 = por %p41, %p42
      %p44 = scmp.ne.s32.totalorder %s30, %s31
      %p45 = scmp.eq.s32.totalorder %s23, 1
      %p46 = por %p44, %p45
      %p48 = scmp.ne.s32.totalorder %s31, %s47
      %p49 = scmp.eq.s32.totalorder %s23, 0
      %p50 = por %p48, %p49
      %s52 = sadd.s32 %s51, 1
      %p55 = scmp.eq.s32.totalorder %s17, 1
      %p56 = scmp.ne.s32.totalorder %s51, %s53
      %p57 = scmp.eq.s32.totalorder %s17, 0
      %p58 = por %p56, %p57
      %p59 = scmp.ne.s32.totalorder %s51, %s53
      %p60 = scmp.eq.s32.totalorder %s22, 1
      %p61 = por %p59, %p60
      %p62 = scmp.ne.s32.totalorder %s53, %s54
      %p63 = scmp.eq.s32.totalorder %s22, 0
      %p64 = por %p62, %p63
      %p65 = scmp.ne.s32.totalorder %s53, %s54
      %p66 = scmp.eq.s32.totalorder %s23, 1
      %p67 = por %p65, %p66
      %p69 = scmp.ne.s32.totalorder %s54, %s68
      %p70 = scmp.eq.s32.totalorder %s23, 0
      %p71 = por %p69, %p70
      %s72 = ssub.s32 %s17, %s24
      %p73 = scmp.eq.s32.totalorder %s72, 0
      %s75 = sadd.s32 %s74, 1
      %s76 = scalar_select %p73, %s74, %s75
      %p79 = pneg %p73
      %p80 = scmp.eq.s32.totalorder %s17, 1
      %p81 = por %p79, %p80
      %p82 = scmp.ne.s32.totalorder %s74, %s77
      %p83 = scmp.eq.s32.totalorder %s17, 0
      %p84 = por %p82, %p83
      %p85 = scmp.ne.s32.totalorder %s74, %s77
      %p86 = scmp.eq.s32.totalorder %s22, 1
      %p87 = por %p85, %p86
      %p88 = scmp.ne.s32.totalorder %s77, %s78
      %p89 = scmp.eq.s32.totalorder %s22, 0
      %p90 = por %p88, %p89
      %p91 = scmp.ne.s32.totalorder %s77, %s78
      %p92 = scmp.eq.s32.totalorder %s23, 1
      %p93 = por %p91, %p92
      %p95 = scmp.ne.s32.totalorder %s78, %s94
      %p96 = scmp.eq.s32.totalorder %s23, 0
      %p97 = por %p95, %p96
      %s99 = sadd.s32 %s98, 1
      %p102 = scmp.eq.s32.totalorder %s17, 1
      %p103 = scmp.ne.s32.totalorder %s98, %s100
      %p104 = scmp.eq.s32.totalorder %s17, 0
      %p105 = por %p103, %p104
      %p106 = scmp.ne.s32.totalorder %s98, %s100
      %p107 = scmp.eq.s32.totalorder %s22, 1
      %p108 = por %p106, %p107
      %p109 = scmp.ne.s32.totalorder %s100, %s101
      %p110 = scmp.eq.s32.totalorder %s22, 0
      %p111 = por %p109, %p110
      %p112 = scmp.ne.s32.totalorder %s100, %s101
      %p113 = scmp.eq.s32.totalorder %s23, 1
      %p114 = por %p112, %p113
      %p116 = scmp.ne.s32.totalorder %s101, %s115
      %p117 = scmp.eq.s32.totalorder %s23, 0
      %p118 = por %p116, %p117
      %p119 = scmp.le.s32.totalorder 1, %s17
      %p120 = scmp.lt.s32.totalorder %s17, 3
      %p121 = pnand %p119, %p120
      %p122 = pneg %p121
      // Predicated region
      $region9: #{tpu_custom_call.1} parent=5 // pred_check
        _
      $region10: #{tpu_custom_call.1} parent=5 // pred_check_branch
        %124 = sbr.rel (%p121) target = $region12
      $region11: #{tpu_custom_call.1} parent=5 // pred_region
        %s125 = ssub.s32 %s17, 1
        // Predicated region
        $region13: #{tpu_custom_call.1} parent=11 // pred_check
          %p126 = pneg %p64
        $region14: #{tpu_custom_call.1} parent=11 // pred_check_branch
          %128 = sbr.rel (%p126) target = $region16
        $region15: #{tpu_custom_call.1} parent=11 // pred_region
          %s130 = ssub.s32 64, 64
          %131 = vsyncadd [#allocation7], %s130
          %s132 = sshll.u32 [#allocation6], 4
          %s133 = int_to_ptr.vmem [resolvable:$true] %s132
          %138 = dma.hbm_to_vmem [thread:$0]  %s1, 64, %s133, [#allocation7], 16, 16, 1
        $region16: #{tpu_custom_call.1} parent=11 // pred_fallthru
          _
      $region12: #{tpu_custom_call.1} parent=5 // pred_fallthru
        _
      %p139 = scmp.lt.s32.totalorder %s17, 2
      // Predicated region
      $region17: #{tpu_custom_call.1} parent=5 // pred_check
        %p140 = pneg %p139
      $region18: #{tpu_custom_call.1} parent=5 // pred_check_branch
        %142 = sbr.rel (%p140) target = $region20
      $region19: #{tpu_custom_call.1} parent=5 // pred_region
        // Predicated region
        $region21: #{tpu_custom_call.1} parent=19 // pred_check
          %p143 = pneg %p37
        $region22: #{tpu_custom_call.1} parent=19 // pred_check_branch
          %145 = sbr.rel (%p143) target = $region24
        $region23: #{tpu_custom_call.1} parent=19 // pred_region
          %s146 = sand.u32 %s27, 1
          %s147 = scalar_lea.sflag [#allocation4], %s146
          %s148 = sand.u32 %s27, 1
          %s149 = smul.addr %s148, 64
          %s150 = scalar_lea.vmem [#allocation3], %s149
          %s152 = ssub.s32 1024, 1024
          %153 = vsyncadd %s147, %s152
          %s154 = smul.addr %s17, 8
          %s155 = smul.addr %s154, 128
          %s156 = scalar_lea.hbm %s0, %s155
          %s157 = sshll.u32 %s150, 4
          %s158 = int_to_ptr.vmem [resolvable:$true] %s157
          %163 = dma.hbm_to_vmem [thread:$0]  %s156, 1024, %s158, %s147, 128, 128, 8
        $region24: #{tpu_custom_call.1} parent=19 // pred_fallthru
          _
      $region20: #{tpu_custom_call.1} parent=5 // pred_fallthru
        _
      %p164 = scmp.le.s32.totalorder 1, %s17
      %p165 = scmp.lt.s32.totalorder %s17, 3
      %p166 = pnand %p164, %p165
      %p167 = pneg %p166
      // Predicated region
      $region25: #{tpu_custom_call.1} parent=5 // pred_check
        _
      $region26: #{tpu_custom_call.1} parent=5 // pred_check_branch
        %169 = sbr.rel (%p166) target = $region28
      $region27: #{tpu_custom_call.1} parent=5 // pred_region
        %s170 = ssub.s32 %s17, 1
        %s171 = sand.u32 %s30, 1
        %s172 = scalar_lea.sflag [#allocation4], %s171
        %s173 = sand.u32 %s30, 1
        %s174 = smul.addr %s173, 64
        %s175 = scalar_lea.vmem [#allocation3], %s174
        // Predicated region
        $region29: #{tpu_custom_call.1} parent=27 // pred_check
          %p176 = pneg %p43
        $region30: #{tpu_custom_call.1} parent=27 // pred_check_branch
          %178 = sbr.rel (%p176) target = $region32
        $region31: #{tpu_custom_call.1} parent=27 // pred_region
          %179 = dma.done %s172, 1024
        $region32: #{tpu_custom_call.1} parent=27 // pred_fallthru
          _
        // Predicated region
        $region33: #{tpu_custom_call.1} parent=27 // pred_check
          %p180 = pneg %p64
        $region34: #{tpu_custom_call.1} parent=27 // pred_check_branch
          %182 = sbr.rel (%p180) target = $region36
        $region35: #{tpu_custom_call.1} parent=27 // pred_region
          %183 = dma.done [#allocation7], 64
        $region36: #{tpu_custom_call.1} parent=27 // pred_fallthru
          _
        %s184 = sand.u32 %s30, 1
        %s185 = scalar_lea.sflag [#allocation4], %s184
        %s186 = sand.u32 %s30, 1
        %s187 = smul.addr %s186, 64
        %s188 = scalar_lea.vmem [#allocation3], %s187
        %p189 = pneg %p43
        %p190 = pneg %p40
        %p191 = pneg %p64
        %p192 = pneg %p61
        %p193 = pneg %p90
        %p194 = pneg %p87
        %s195 = sand.u32 %s77, 1
        %s196 = scalar_lea.sflag [#allocation5], %s195
        %s197 = sand.u32 %s77, 1
        %s198 = smul.addr %s197, 64
        %s199 = scalar_lea.vmem [#allocation8], %s198
        %p200 = pneg %p111
        %p201 = pneg %p108
        %p202 = scmp.eq.s32.totalorder %s22, 0
        // Predicated region
        $region37: #{tpu_custom_call.1} parent=27 // pred_check
          %p203 = pneg %p202
        $region38: #{tpu_custom_call.1} parent=27 // pred_check_branch
          %205 = sbr.rel (%p203) target = $region40
        $region39: #{tpu_custom_call.1} parent=27 // pred_region
          %vm206 = vcmask 11264
          %207 = vst.msk [vmem:[%s3] sm:$0xf] %vm206, 0.0
          %vm208 = vcmask 146432
          %209 = vst.msk [vmem:[#allocation2] sm:$0xff] %vm208, 0.0
          %210 = vst.msk [vmem:[#allocation2 + $0x8] sm:$0xff] %vm208, 0.0
          %vm211 = vcmask 140288
          %212 = vst.msk [vmem:[#allocation2 + $0x10] sm:$0x3] %vm211, 0.0
          %213 = vst.msk [vmem:[#allocation2 + $0x18] sm:$0xff] %vm208, 0.0
          %214 = vst.msk [vmem:[#allocation2 + $0x20] sm:$0xff] %vm208, 0.0
          %215 = vst.msk [vmem:[#allocation2 + $0x28] sm:$0x3] %vm211, 0.0
          %216 = vst.msk [vmem:[#allocation2 + $0x30] sm:$0xff] %vm208, 0.0
          %217 = vst.msk [vmem:[#allocation2 + $0x38] sm:$0xff] %vm208, 0.0
          %218 = vst.msk [vmem:[#allocation2 + $0x40] sm:$0x3] %vm211, 0.0
          %219 = vst.msk [vmem:[#allocation2 + $0x48] sm:$0xff] %vm208, 0.0
          %220 = vst.msk [vmem:[#allocation2 + $0x50] sm:$0xff] %vm208, 0.0
          %221 = vst.msk [vmem:[#allocation2 + $0x58] sm:$0x3] %vm211, 0.0
        $region40: #{tpu_custom_call.1} parent=27 // pred_fallthru
          _
        %v222 = vld [vmem:[%s175] sm:$0xff]
        %v223 = vld [vmem:[%s175 + $0x8] sm:$0xff]
        %v224 = vld [vmem:[%s175 + $0x10] sm:$0xff]
        %v225 = vld [vmem:[%s175 + $0x18] sm:$0xff]
        %v226 = vld [vmem:[%s175 + $0x20] sm:$0xff]
        %v227 = vld [vmem:[%s175 + $0x28] sm:$0xff]
        %v228 = vld [vmem:[%s175 + $0x30] sm:$0xff]
        %v229 = vld [vmem:[%s175 + $0x38] sm:$0xff]
        %238 = vrot.lane.b32.xlu0 %v222, 1
        %v239 = vpop.permute.xlu0 %238
        %240 = vrot.lane.b32.xlu0 %v223, 1
        %v241 = vpop.permute.xlu0 %240
        %242 = vrot.lane.b32.xlu0 %v224, 1
        %v243 = vpop.permute.xlu0 %242
        %244 = vrot.lane.b32.xlu0 %v225, 1
        %v245 = vpop.permute.xlu0 %244
        %246 = vrot.lane.b32.xlu0 %v226, 1
        %v247 = vpop.permute.xlu0 %246
        %248 = vrot.lane.b32.xlu0 %v227, 1
        %v249 = vpop.permute.xlu0 %248
        %250 = vrot.lane.b32.xlu0 %v228, 1
        %v251 = vpop.permute.xlu0 %250
        %252 = vrot.lane.b32.xlu0 %v229, 1
        %v253 = vpop.permute.xlu0 %252
        %vm262 = vcmask 138248
        %263 = vst.msk [vmem:[#allocation2 + $0x1] sm:$0xff] %vm262, %v239
        %264 = vst.msk [vmem:[#allocation2 + $0x9] sm:$0xff] %vm262, %v241
        %265 = vst.msk [vmem:[#allocation2 + $0x19] sm:$0xff] %vm262, %v243
        %266 = vst.msk [vmem:[#allocation2 + $0x21] sm:$0xff] %vm262, %v245
        %267 = vst.msk [vmem:[#allocation2 + $0x31] sm:$0xff] %vm262, %v247
        %268 = vst.msk [vmem:[#allocation2 + $0x39] sm:$0xff] %vm262, %v249
        %269 = vst.msk [vmem:[#allocation2 + $0x49] sm:$0xff] %vm262, %v251
        %270 = vst.msk [vmem:[#allocation2 + $0x51] sm:$0xff] %vm262, %v253
        %v271 = vld [vmem:[#allocation6] sm:$0x1]
        %v272 = vld [vmem:[#allocation6 + $0x1] sm:$0x1]
        %v273 = vld [vmem:[#allocation6 + $0x2] sm:$0x1]
        %v274 = vld [vmem:[#allocation6 + $0x3] sm:$0x1]
        %v275 = vld [vmem:[#allocation2] sm:$0xff]
        %v276 = vld [vmem:[#allocation2 + $0x8] sm:$0xff]
        %v277 = vld [vmem:[#allocation2 + $0x18] sm:$0xff]
        %v278 = vld [vmem:[#allocation2 + $0x20] sm:$0xff]
        %v279 = vld [vmem:[#allocation2 + $0x30] sm:$0xff]
        %v280 = vld [vmem:[#allocation2 + $0x38] sm:$0xff]
        %v281 = vld [vmem:[#allocation2 + $0x48] sm:$0xff]
        %v282 = vld [vmem:[#allocation2 + $0x50] sm:$0xff]
        %v287 = vlaneseq
        %v288 = vshrl.u32 %v287, 7
        %v289 = vsub.s32 0, %v288
        %v290 = vrot.slane %v271, %v289
        %v291 = vlaneseq
        %v292 = vshrl.u32 %v291, 7
        %v293 = vsub.s32 0, %v292
        %v294 = vrot.slane %v272, %v293
        %v295 = vlaneseq
        %v296 = vshrl.u32 %v295, 7
        %v297 = vsub.s32 0, %v296
        %v298 = vrot.slane %v273, %v297
        %v299 = vlaneseq
        %v300 = vshrl.u32 %v299, 7
        %v301 = vsub.s32 0, %v300
        %v302 = vrot.slane %v274, %v301
        %303 = vset.pattern.permute.xlu0 0
        %304 = vperm.xlu0 %303, %v290
        %v305 = vpop.permute.xlu0 %304
        %307 = vset.pattern.permute.xlu0 0
        %308 = vperm.xlu0 %307, %v294
        %v309 = vpop.permute.xlu0 %308
        %311 = vset.pattern.permute.xlu0 0
        %312 = vperm.xlu0 %311, %v298
        %v313 = vpop.permute.xlu0 %312
        %315 = vset.pattern.permute.xlu0 0
        %316 = vperm.xlu0 %315, %v302
        %v317 = vpop.permute.xlu0 %316
        %v319 = vmul.f32 %v275, %v305
        %v320 = vmul.f32 %v276, %v305
        %v321 = vmul.f32 %v277, %v309
        %v322 = vmul.f32 %v278, %v309
        %v323 = vmul.f32 %v279, %v313
        %v324 = vmul.f32 %v280, %v313
        %v325 = vmul.f32 %v281, %v317
        %v326 = vmul.f32 %v282, %v317
        %v327 = vadd.f32 %v319, 0.0
        %v328 = vadd.f32 %v320, 0.0
        %v329 = vadd.f32 %v321, 0.0
        %v330 = vadd.f32 %v322, 0.0
        %v331 = vadd.f32 %v323, 0.0
        %v332 = vadd.f32 %v324, 0.0
        %v333 = vadd.f32 %v325, 0.0
        %v334 = vadd.f32 %v326, 0.0
        %335 = vset.pattern.permute.xlu0 1
        %336 = vperm.xlu0 %335, %v290
        %v337 = vpop.permute.xlu0 %336
        %339 = vset.pattern.permute.xlu0 1
        %340 = vperm.xlu0 %339, %v294
        %v341 = vpop.permute.xlu0 %340
        %343 = vset.pattern.permute.xlu0 1
        %344 = vperm.xlu0 %343, %v298
        %v345 = vpop.permute.xlu0 %344
        %347 = vset.pattern.permute.xlu0 1
        %348 = vperm.xlu0 %347, %v302
        %v349 = vpop.permute.xlu0 %348
        %v351 = vmul.f32 %v275, %v337
        %v352 = vmul.f32 %v276, %v337
        %v353 = vmul.f32 %v277, %v341
        %v354 = vmul.f32 %v278, %v341
        %v355 = vmul.f32 %v279, %v345
        %v356 = vmul.f32 %v280, %v345
        %v357 = vmul.f32 %v281, %v349
        %v358 = vmul.f32 %v282, %v349
        %367 = vrot.lane.b32.xlu0 %v351, 127
        %v368 = vpop.permute.xlu0 %367
        %369 = vrot.lane.b32.xlu0 %v352, 127
        %v370 = vpop.permute.xlu0 %369
        %371 = vrot.lane.b32.xlu0 %v353, 127
        %v372 = vpop.permute.xlu0 %371
        %373 = vrot.lane.b32.xlu0 %v354, 127
        %v374 = vpop.permute.xlu0 %373
        %375 = vrot.lane.b32.xlu0 %v355, 127
        %v376 = vpop.permute.xlu0 %375
        %377 = vrot.lane.b32.xlu0 %v356, 127
        %v378 = vpop.permute.xlu0 %377
        %379 = vrot.lane.b32.xlu0 %v357, 127
        %v380 = vpop.permute.xlu0 %379
        %381 = vrot.lane.b32.xlu0 %v358, 127
        %v382 = vpop.permute.xlu0 %381
        %v391 = vadd.f32 %v327, %v368
        %v392 = vadd.f32 %v328, %v370
        %v393 = vadd.f32 %v329, %v372
        %v394 = vadd.f32 %v330, %v374
        %v395 = vadd.f32 %v331, %v376
        %v396 = vadd.f32 %v332, %v378
        %v397 = vadd.f32 %v333, %v380
        %v398 = vadd.f32 %v334, %v382
        %399 = vset.pattern.permute.xlu0 2
        %400 = vperm.xlu0 %399, %v290
        %v401 = vpop.permute.xlu0 %400
        %403 = vset.pattern.permute.xlu0 2
        %404 = vperm.xlu0 %403, %v294
        %v405 = vpop.permute.xlu0 %404
        %407 = vset.pattern.permute.xlu0 2
        %408 = vperm.xlu0 %407, %v298
        %v409 = vpop.permute.xlu0 %408
        %411 = vset.pattern.permute.xlu0 2
        %412 = vperm.xlu0 %411, %v302
        %v413 = vpop.permute.xlu0 %412
        %v415 = vmul.f32 %v275, %v401
        %v416 = vmul.f32 %v276, %v401
        %v417 = vmul.f32 %v277, %v405
        %v418 = vmul.f32 %v278, %v405
        %v419 = vmul.f32 %v279, %v409
        %v420 = vmul.f32 %v280, %v409
        %v421 = vmul.f32 %v281, %v413
        %v422 = vmul.f32 %v282, %v413
        %431 = vrot.lane.b32.xlu0 %v415, 126
        %v432 = vpop.permute.xlu0 %431
        %433 = vrot.lane.b32.xlu0 %v416, 126
        %v434 = vpop.permute.xlu0 %433
        %435 = vrot.lane.b32.xlu0 %v417, 126
        %v436 = vpop.permute.xlu0 %435
        %437 = vrot.lane.b32.xlu0 %v418, 126
        %v438 = vpop.permute.xlu0 %437
        %439 = vrot.lane.b32.xlu0 %v419, 126
        %v440 = vpop.permute.xlu0 %439
        %441 = vrot.lane.b32.xlu0 %v420, 126
        %v442 = vpop.permute.xlu0 %441
        %443 = vrot.lane.b32.xlu0 %v421, 126
        %v444 = vpop.permute.xlu0 %443
        %445 = vrot.lane.b32.xlu0 %v422, 126
        %v446 = vpop.permute.xlu0 %445
        %v455 = vadd.f32 %v391, %v432
        %v456 = vadd.f32 %v392, %v434
        %v457 = vadd.f32 %v393, %v436
        %v458 = vadd.f32 %v394, %v438
        %v459 = vadd.f32 %v395, %v440
        %v460 = vadd.f32 %v396, %v442
        %v461 = vadd.f32 %v397, %v444
        %v462 = vadd.f32 %v398, %v446
        %v463 = vld [vmem:[#allocation2 + $0x1] sm:$0xff]
        %v464 = vld [vmem:[#allocation2 + $0x9] sm:$0xff]
        %v465 = vld [vmem:[#allocation2 + $0x19] sm:$0xff]
        %v466 = vld [vmem:[#allocation2 + $0x21] sm:$0xff]
        %v467 = vld [vmem:[#allocation2 + $0x31] sm:$0xff]
        %v468 = vld [vmem:[#allocation2 + $0x39] sm:$0xff]
        %v469 = vld [vmem:[#allocation2 + $0x49] sm:$0xff]
        %v470 = vld [vmem:[#allocation2 + $0x51] sm:$0xff]
        %471 = vset.pattern.permute.xlu0 3
        %472 = vperm.xlu0 %471, %v290
        %v473 = vpop.permute.xlu0 %472
        %475 = vset.pattern.permute.xlu0 3
        %476 = vperm.xlu0 %475, %v294
        %v477 = vpop.permute.xlu0 %476
        %479 = vset.pattern.permute.xlu0 3
        %480 = vperm.xlu0 %479, %v298
        %v481 = vpop.permute.xlu0 %480
        %483 = vset.pattern.permute.xlu0 3
        %484 = vperm.xlu0 %483, %v302
        %v485 = vpop.permute.xlu0 %484
        %v487 = vmul.f32 %v463, %v473
        %v488 = vmul.f32 %v464, %v473
        %v489 = vmul.f32 %v465, %v477
        %v490 = vmul.f32 %v466, %v477
        %v491 = vmul.f32 %v467, %v481
        %v492 = vmul.f32 %v468, %v481
        %v493 = vmul.f32 %v469, %v485
        %v494 = vmul.f32 %v470, %v485
        %v495 = vadd.f32 %v455, %v487
        %v496 = vadd.f32 %v456, %v488
        %v497 = vadd.f32 %v457, %v489
        %v498 = vadd.f32 %v458, %v490
        %v499 = vadd.f32 %v459, %v491
        %v500 = vadd.f32 %v460, %v492
        %v501 = vadd.f32 %v461, %v493
        %v502 = vadd.f32 %v462, %v494
        %503 = vset.pattern.permute.xlu0 4
        %504 = vperm.xlu0 %503, %v290
        %v505 = vpop.permute.xlu0 %504
        %507 = vset.pattern.permute.xlu0 4
        %508 = vperm.xlu0 %507, %v294
        %v509 = vpop.permute.xlu0 %508
        %511 = vset.pattern.permute.xlu0 4
        %512 = vperm.xlu0 %511, %v298
        %v513 = vpop.permute.xlu0 %512
        %515 = vset.pattern.permute.xlu0 4
        %516 = vperm.xlu0 %515, %v302
        %v517 = vpop.permute.xlu0 %516
        %v519 = vmul.f32 %v463, %v505
        %v520 = vmul.f32 %v464, %v505
        %v521 = vmul.f32 %v465, %v509
        %v522 = vmul.f32 %v466, %v509
        %v523 = vmul.f32 %v467, %v513
        %v524 = vmul.f32 %v468, %v513
        %v525 = vmul.f32 %v469, %v517
        %v526 = vmul.f32 %v470, %v517
        %535 = vrot.lane.b32.xlu0 %v519, 127
        %v536 = vpop.permute.xlu0 %535
        %537 = vrot.lane.b32.xlu0 %v520, 127
        %v538 = vpop.permute.xlu0 %537
        %539 = vrot.lane.b32.xlu0 %v521, 127
        %v540 = vpop.permute.xlu0 %539
        %541 = vrot.lane.b32.xlu0 %v522, 127
        %v542 = vpop.permute.xlu0 %541
        %543 = vrot.lane.b32.xlu0 %v523, 127
        %v544 = vpop.permute.xlu0 %543
        %545 = vrot.lane.b32.xlu0 %v524, 127
        %v546 = vpop.permute.xlu0 %545
        %547 = vrot.lane.b32.xlu0 %v525, 127
        %v548 = vpop.permute.xlu0 %547
        %549 = vrot.lane.b32.xlu0 %v526, 127
        %v550 = vpop.permute.xlu0 %549
        %v559 = vadd.f32 %v495, %v536
        %v560 = vadd.f32 %v496, %v538
        %v561 = vadd.f32 %v497, %v540
        %v562 = vadd.f32 %v498, %v542
        %v563 = vadd.f32 %v499, %v544
        %v564 = vadd.f32 %v500, %v546
        %v565 = vadd.f32 %v501, %v548
        %v566 = vadd.f32 %v502, %v550
        %567 = vset.pattern.permute.xlu0 5
        %568 = vperm.xlu0 %567, %v290
        %v569 = vpop.permute.xlu0 %568
        %571 = vset.pattern.permute.xlu0 5
        %572 = vperm.xlu0 %571, %v294
        %v573 = vpop.permute.xlu0 %572
        %575 = vset.pattern.permute.xlu0 5
        %576 = vperm.xlu0 %575, %v298
        %v577 = vpop.permute.xlu0 %576
        %579 = vset.pattern.permute.xlu0 5
        %580 = vperm.xlu0 %579, %v302
        %v581 = vpop.permute.xlu0 %580
        %v583 = vmul.f32 %v463, %v569
        %v584 = vmul.f32 %v464, %v569
        %v585 = vmul.f32 %v465, %v573
        %v586 = vmul.f32 %v466, %v573
        %v587 = vmul.f32 %v467, %v577
        %v588 = vmul.f32 %v468, %v577
        %v589 = vmul.f32 %v469, %v581
        %v590 = vmul.f32 %v470, %v581
        %599 = vrot.lane.b32.xlu0 %v583, 126
        %v600 = vpop.permute.xlu0 %599
        %601 = vrot.lane.b32.xlu0 %v584, 126
        %v602 = vpop.permute.xlu0 %601
        %603 = vrot.lane.b32.xlu0 %v585, 126
        %v604 = vpop.permute.xlu0 %603
        %605 = vrot.lane.b32.xlu0 %v586, 126
        %v606 = vpop.permute.xlu0 %605
        %607 = vrot.lane.b32.xlu0 %v587, 126
        %v608 = vpop.permute.xlu0 %607
        %609 = vrot.lane.b32.xlu0 %v588, 126
        %v610 = vpop.permute.xlu0 %609
        %611 = vrot.lane.b32.xlu0 %v589, 126
        %v612 = vpop.permute.xlu0 %611
        %613 = vrot.lane.b32.xlu0 %v590, 126
        %v614 = vpop.permute.xlu0 %613
        %v623 = vadd.f32 %v559, %v600
        %v624 = vadd.f32 %v560, %v602
        %v625 = vadd.f32 %v561, %v604
        %v626 = vadd.f32 %v562, %v606
        %v627 = vadd.f32 %v563, %v608
        %v628 = vadd.f32 %v564, %v610
        %v629 = vadd.f32 %v565, %v612
        %v630 = vadd.f32 %v566, %v614
        %v631 = vld [vmem:[#allocation2 + $0x2] sm:$0xff]
        %v632 = vld [vmem:[#allocation2 + $0xa] sm:$0xff]
        %v633 = vld [vmem:[#allocation2 + $0x1a] sm:$0xff]
        %v634 = vld [vmem:[#allocation2 + $0x22] sm:$0xff]
        %v635 = vld [vmem:[#allocation2 + $0x32] sm:$0xff]
        %v636 = vld [vmem:[#allocation2 + $0x3a] sm:$0xff]
        %v637 = vld [vmem:[#allocation2 + $0x4a] sm:$0xff]
        %v638 = vld [vmem:[#allocation2 + $0x52] sm:$0xff]
        %639 = vset.pattern.permute.xlu0 6
        %640 = vperm.xlu0 %639, %v290
        %v641 = vpop.permute.xlu0 %640
        %643 = vset.pattern.permute.xlu0 6
        %644 = vperm.xlu0 %643, %v294
        %v645 = vpop.permute.xlu0 %644
        %647 = vset.pattern.permute.xlu0 6
        %648 = vperm.xlu0 %647, %v298
        %v649 = vpop.permute.xlu0 %648
        %651 = vset.pattern.permute.xlu0 6
        %652 = vperm.xlu0 %651, %v302
        %v653 = vpop.permute.xlu0 %652
        %v655 = vmul.f32 %v631, %v641
        %v656 = vmul.f32 %v632, %v641
        %v657 = vmul.f32 %v633, %v645
        %v658 = vmul.f32 %v634, %v645
        %v659 = vmul.f32 %v635, %v649
        %v660 = vmul.f32 %v636, %v649
        %v661 = vmul.f32 %v637, %v653
        %v662 = vmul.f32 %v638, %v653
        %v663 = vadd.f32 %v623, %v655
        %v664 = vadd.f32 %v624, %v656
        %v665 = vadd.f32 %v625, %v657
        %v666 = vadd.f32 %v626, %v658
        %v667 = vadd.f32 %v627, %v659
        %v668 = vadd.f32 %v628, %v660
        %v669 = vadd.f32 %v629, %v661
        %v670 = vadd.f32 %v630, %v662
        %671 = vset.pattern.permute.xlu0 7
        %672 = vperm.xlu0 %671, %v290
        %v673 = vpop.permute.xlu0 %672
        %675 = vset.pattern.permute.xlu0 7
        %676 = vperm.xlu0 %675, %v294
        %v677 = vpop.permute.xlu0 %676
        %679 = vset.pattern.permute.xlu0 7
        %680 = vperm.xlu0 %679, %v298
        %v681 = vpop.permute.xlu0 %680
        %683 = vset.pattern.permute.xlu0 7
        %684 = vperm.xlu0 %683, %v302
        %v685 = vpop.permute.xlu0 %684
        %v687 = vmul.f32 %v631, %v673
        %v688 = vmul.f32 %v632, %v673
        %v689 = vmul.f32 %v633, %v677
        %v690 = vmul.f32 %v634, %v677
        %v691 = vmul.f32 %v635, %v681
        %v692 = vmul.f32 %v636, %v681
        %v693 = vmul.f32 %v637, %v685
        %v694 = vmul.f32 %v638, %v685
        %703 = vrot.lane.b32.xlu0 %v687, 127
        %v704 = vpop.permute.xlu0 %703
        %705 = vrot.lane.b32.xlu0 %v688, 127
        %v706 = vpop.permute.xlu0 %705
        %707 = vrot.lane.b32.xlu0 %v689, 127
        %v708 = vpop.permute.xlu0 %707
        %709 = vrot.lane.b32.xlu0 %v690, 127
        %v710 = vpop.permute.xlu0 %709
        %711 = vrot.lane.b32.xlu0 %v691, 127
        %v712 = vpop.permute.xlu0 %711
        %713 = vrot.lane.b32.xlu0 %v692, 127
        %v714 = vpop.permute.xlu0 %713
        %715 = vrot.lane.b32.xlu0 %v693, 127
        %v716 = vpop.permute.xlu0 %715
        %717 = vrot.lane.b32.xlu0 %v694, 127
        %v718 = vpop.permute.xlu0 %717
        %v727 = vadd.f32 %v663, %v704
        %v728 = vadd.f32 %v664, %v706
        %v729 = vadd.f32 %v665, %v708
        %v730 = vadd.f32 %v666, %v710
        %v731 = vadd.f32 %v667, %v712
        %v732 = vadd.f32 %v668, %v714
        %v733 = vadd.f32 %v669, %v716
        %v734 = vadd.f32 %v670, %v718
        %735 = vset.pattern.permute.xlu0 8
        %736 = vperm.xlu0 %735, %v290
        %v737 = vpop.permute.xlu0 %736
        %739 = vset.pattern.permute.xlu0 8
        %740 = vperm.xlu0 %739, %v294
        %v741 = vpop.permute.xlu0 %740
        %743 = vset.pattern.permute.xlu0 8
        %744 = vperm.xlu0 %743, %v298
        %v745 = vpop.permute.xlu0 %744
        %747 = vset.pattern.permute.xlu0 8
        %748 = vperm.xlu0 %747, %v302
        %v749 = vpop.permute.xlu0 %748
        %v751 = vmul.f32 %v631, %v737
        %v752 = vmul.f32 %v632, %v737
        %v753 = vmul.f32 %v633, %v741
        %v754 = vmul.f32 %v634, %v741
        %v755 = vmul.f32 %v635, %v745
        %v756 = vmul.f32 %v636, %v745
        %v757 = vmul.f32 %v637, %v749
        %v758 = vmul.f32 %v638, %v749
        %767 = vrot.lane.b32.xlu0 %v751, 126
        %v768 = vpop.permute.xlu0 %767
        %769 = vrot.lane.b32.xlu0 %v752, 126
        %v770 = vpop.permute.xlu0 %769
        %771 = vrot.lane.b32.xlu0 %v753, 126
        %v772 = vpop.permute.xlu0 %771
        %773 = vrot.lane.b32.xlu0 %v754, 126
        %v774 = vpop.permute.xlu0 %773
        %775 = vrot.lane.b32.xlu0 %v755, 126
        %v776 = vpop.permute.xlu0 %775
        %777 = vrot.lane.b32.xlu0 %v756, 126
        %v778 = vpop.permute.xlu0 %777
        %779 = vrot.lane.b32.xlu0 %v757, 126
        %v780 = vpop.permute.xlu0 %779
        %781 = vrot.lane.b32.xlu0 %v758, 126
        %v782 = vpop.permute.xlu0 %781
        %v791 = vadd.f32 %v727, %v768
        %v792 = vadd.f32 %v728, %v770
        %v793 = vadd.f32 %v729, %v772
        %v794 = vadd.f32 %v730, %v774
        %v795 = vadd.f32 %v731, %v776
        %v796 = vadd.f32 %v732, %v778
        %v797 = vadd.f32 %v733, %v780
        %v798 = vadd.f32 %v734, %v782
        %vm799 = vcmask 130048
        %800 = vst.msk [vmem:[%s199] sm:$0xff] %vm799, %v791
        %801 = vst.msk [vmem:[%s199 + $0x8] sm:$0xff] %vm799, %v792
        %802 = vst.msk [vmem:[%s199 + $0x10] sm:$0xff] %vm799, %v793
        %803 = vst.msk [vmem:[%s199 + $0x18] sm:$0xff] %vm799, %v794
        %804 = vst.msk [vmem:[%s199 + $0x20] sm:$0xff] %vm799, %v795
        %805 = vst.msk [vmem:[%s199 + $0x28] sm:$0xff] %vm799, %v796
        %806 = vst.msk [vmem:[%s199 + $0x30] sm:$0xff] %vm799, %v797
        %807 = vst.msk [vmem:[%s199 + $0x38] sm:$0xff] %vm799, %v798
        %v808 = vsel %vm799, %v791, 0.0
        %809 = vadd.xlane.f32.xlu0 %v808
        %v810 = vpop.xlane.xlu0 %809
        %v811 = vsel %vm799, %v792, 0.0
        %812 = vadd.xlane.f32.xlu0 %v811
        %v813 = vpop.xlane.xlu0 %812
        %v814 = vsel %vm799, %v793, 0.0
        %815 = vadd.xlane.f32.xlu0 %v814
        %v816 = vpop.xlane.xlu0 %815
        %v817 = vsel %vm799, %v794, 0.0
        %818 = vadd.xlane.f32.xlu0 %v817
        %v819 = vpop.xlane.xlu0 %818
        %v820 = vsel %vm799, %v795, 0.0
        %821 = vadd.xlane.f32.xlu0 %v820
        %v822 = vpop.xlane.xlu0 %821
        %v823 = vsel %vm799, %v796, 0.0
        %824 = vadd.xlane.f32.xlu0 %v823
        %v825 = vpop.xlane.xlu0 %824
        %v826 = vsel %vm799, %v797, 0.0
        %827 = vadd.xlane.f32.xlu0 %v826
        %v828 = vpop.xlane.xlu0 %827
        %v829 = vsel %vm799, %v798, 0.0
        %830 = vadd.xlane.f32.xlu0 %v829
        %v831 = vpop.xlane.xlu0 %830
        %v840 = vlaneseq
        %v841 = vand.u32 %v840, 127
        %v842 = vlaneseq
        %v843 = vshrl.u32 %v842, 7
        %v844 = vsub.s32 %v841, %v843
        %v845 = vrot.slane %v810, %v844
        %v846 = vadd.s32 %v841, 4294967288
        %v847 = vlaneseq
        %v848 = vshrl.u32 %v847, 7
        %v849 = vsub.s32 %v846, %v848
        %v850 = vrot.slane %v813, %v849
        %vm851 = vcmask 130112
        %v852 = vsel %vm851, %v850, %v845
        %v853 = vlaneseq
        %v854 = vshrl.u32 %v853, 7
        %v855 = vsub.s32 %v841, %v854
        %v856 = vrot.slane %v816, %v855
        %v857 = vlaneseq
        %v858 = vshrl.u32 %v857, 7
        %v859 = vsub.s32 %v846, %v858
        %v860 = vrot.slane %v819, %v859
        %v861 = vsel %vm851, %v860, %v856
        %v862 = vlaneseq
        %v863 = vshrl.u32 %v862, 7
        %v864 = vsub.s32 %v841, %v863
        %v865 = vrot.slane %v822, %v864
        %v866 = vlaneseq
        %v867 = vshrl.u32 %v866, 7
        %v868 = vsub.s32 %v846, %v867
        %v869 = vrot.slane %v825, %v868
        %v870 = vsel %vm851, %v869, %v865
        %v871 = vlaneseq
        %v872 = vshrl.u32 %v871, 7
        %v873 = vsub.s32 %v841, %v872
        %v874 = vrot.slane %v828, %v873
        %v875 = vlaneseq
        %v876 = vshrl.u32 %v875, 7
        %v877 = vsub.s32 %v846, %v876
        %v878 = vrot.slane %v831, %v877
        %v879 = vsel %vm851, %v878, %v874
        %vm880 = vcmask 1041409
        %v881 = vsel %vm880, %v861, %v852
        %vm882 = vcmask 1042434
        %v883 = vsel %vm882, %v870, %v881
        %vm884 = vcmask 1043459
        %v885 = vsel %vm884, %v879, %v883
        %vm887 = vcmask 125952
        %v888 = vsel %vm887, %v885, 0.0
        %889 = vadd.xlane.f32.xlu0 %v888
        %v890 = vpop.xlane.xlu0 %889
        %v891 = vmul.f32 %v791, %v791
        %v892 = vmul.f32 %v792, %v792
        %v893 = vmul.f32 %v793, %v793
        %v894 = vmul.f32 %v794, %v794
        %v895 = vmul.f32 %v795, %v795
        %v896 = vmul.f32 %v796, %v796
        %v897 = vmul.f32 %v797, %v797
        %v898 = vmul.f32 %v798, %v798
        %v899 = vsel %vm799, %v891, 0.0
        %900 = vadd.xlane.f32.xlu0 %v899
        %v901 = vpop.xlane.xlu0 %900
        %v902 = vsel %vm799, %v892, 0.0
        %903 = vadd.xlane.f32.xlu0 %v902
        %v904 = vpop.xlane.xlu0 %903
        %v905 = vsel %vm799, %v893, 0.0
        %906 = vadd.xlane.f32.xlu0 %v905
        %v907 = vpop.xlane.xlu0 %906
        %v908 = vsel %vm799, %v894, 0.0
        %909 = vadd.xlane.f32.xlu0 %v908
        %v910 = vpop.xlane.xlu0 %909
        %v911 = vsel %vm799, %v895, 0.0
        %912 = vadd.xlane.f32.xlu0 %v911
        %v913 = vpop.xlane.xlu0 %912
        %v914 = vsel %vm799, %v896, 0.0
        %915 = vadd.xlane.f32.xlu0 %v914
        %v916 = vpop.xlane.xlu0 %915
        %v917 = vsel %vm799, %v897, 0.0
        %918 = vadd.xlane.f32.xlu0 %v917
        %v919 = vpop.xlane.xlu0 %918
        %v920 = vsel %vm799, %v898, 0.0
        %921 = vadd.xlane.f32.xlu0 %v920
        %v922 = vpop.xlane.xlu0 %921
        %v931 = vlaneseq
        %v932 = vshrl.u32 %v931, 7
        %v933 = vsub.s32 %v841, %v932
        %v934 = vrot.slane %v901, %v933
        %v935 = vlaneseq
        %v936 = vshrl.u32 %v935, 7
        %v937 = vsub.s32 %v846, %v936
        %v938 = vrot.slane %v904, %v937
        %v939 = vsel %vm851, %v938, %v934
        %v940 = vlaneseq
        %v941 = vshrl.u32 %v940, 7
        %v942 = vsub.s32 %v841, %v941
        %v943 = vrot.slane %v907, %v942
        %v944 = vlaneseq
        %v945 = vshrl.u32 %v944, 7
        %v946 = vsub.s32 %v846, %v945
        %v947 = vrot.slane %v910, %v946
        %v948 = vsel %vm851, %v947, %v943
        %v949 = vlaneseq
        %v950 = vshrl.u32 %v949, 7
        %v951 = vsub.s32 %v841, %v950
        %v952 = vrot.slane %v913, %v951
        %v953 = vlaneseq
        %v954 = vshrl.u32 %v953, 7
        %v955 = vsub.s32 %v846, %v954
        %v956 = vrot.slane %v916, %v955
        %v957 = vsel %vm851, %v956, %v952
        %v958 = vlaneseq
        %v959 = vshrl.u32 %v958, 7
        %v960 = vsub.s32 %v841, %v959
        %v961 = vrot.slane %v919, %v960
        %v962 = vlaneseq
        %v963 = vshrl.u32 %v962, 7
        %v964 = vsub.s32 %v846, %v963
        %v965 = vrot.slane %v922, %v964
        %v966 = vsel %vm851, %v965, %v961
        %v967 = vsel %vm880, %v948, %v939
        %v968 = vsel %vm882, %v957, %v967
        %v969 = vsel %vm884, %v966, %v968
        %v971 = vsel %vm887, %v969, 0.0
        %972 = vadd.xlane.f32.xlu0 %v971
        %v973 = vpop.xlane.xlu0 %972
        %v974 = vld [vmem:[%s3] sm:$0xf]
        %v975 = vadd.f32 %v974, %v890
        %vm976 = vcmask 3072
        %977 = vst.msk [vmem:[%s3] sm:$0xf] %vm976, %v975
        %v978 = vld [vmem:[%s3] sm:$0xf]
        %v979 = vadd.f32 %v978, %v973
        %vm980 = vcmask 11272
        %981 = vst.msk [vmem:[%s3] sm:$0xf] %vm980, %v979
        %s982 = sand.u32 %s77, 1
        %s983 = scalar_lea.sflag [#allocation5], %s982
        %s984 = sand.u32 %s77, 1
        %s985 = smul.addr %s984, 64
        %s986 = scalar_lea.vmem [#allocation8], %s985
        // Predicated region
        $region41: #{tpu_custom_call.1} parent=27 // pred_check
          %p987 = pneg %p87
        $region42: #{tpu_custom_call.1} parent=27 // pred_check_branch
          %989 = sbr.rel (%p987) target = $region44
        $region43: #{tpu_custom_call.1} parent=27 // pred_region
          #allocation10 [shape = 'u32[6]{0}', space=smem, size = 0x18, scoped, tag = 'DMA stride descriptor']
          %s991 = ssub.s32 1024, 1024
          %992 = vsyncadd %s983, %s991
          %s993 = smul.addr %s22, 2
          %s994 = smul.addr %s993, 128
          %s995 = scalar_lea.hbm %s2, %s994
          %s997 = sshll.u32 1, 14
          %s998 = sxor.u32 4294967295, %s997
          %s1001 = sshll.u32 7, 18
          %s1002 = sxor.u32 4294967295, %s1001
          %s1003 = sand.u32 0, %s1002
          %s1005 = sor.u32 %s1003, 0
          %s1007 = sshll.u32 3, 24
          %s1008 = sxor.u32 4294967295, %s1007
          %s1009 = sand.u32 %s1005, %s1008
          %s1011 = sor.u32 %s1009, 0
          %s1012 = sshll.u32 %s986, 4
          %s1013 = int_to_ptr.vmem [resolvable:$true] %s1012
          %1019 = sst [smem:[#allocation10]] 256
          %s1020 = scalar_lea.smem [#allocation10], 1
          %1021 = sst [smem:[%s1020]] 512
          %s1022 = scalar_lea.smem [#allocation10], 2
          %1023 = sst [smem:[%s1022]] 2
          %s1024 = scalar_lea.smem [#allocation10], 3
          %1025 = sst [smem:[%s1024]] 128
          %s1026 = scalar_lea.smem [#allocation10], 4
          %1027 = sst [smem:[%s1026]] 128
          %s1028 = scalar_lea.smem [#allocation10], 5
          %1029 = sst [smem:[%s1028]] 8
          %1031 = dma.general %s1013, 1024, %s995, %s983, [#allocation9], [#allocation10], %s1011, 0
        $region44: #{tpu_custom_call.1} parent=27 // pred_fallthru
          _
        // Predicated region
        $region45: #{tpu_custom_call.1} parent=27 // pred_check
          %p1032 = pneg %p108
        $region46: #{tpu_custom_call.1} parent=27 // pred_check_branch
          %1034 = sbr.rel (%p1032) target = $region48
        $region47: #{tpu_custom_call.1} parent=27 // pred_region
          _
        $region48: #{tpu_custom_call.1} parent=27 // pred_fallthru
          _
        // Predicated region
        $region49: #{tpu_custom_call.1} parent=27 // pred_check
          %p1035 = pneg %p108
        $region50: #{tpu_custom_call.1} parent=27 // pred_check_branch
          %1037 = sbr.rel (%p1035) target = $region52
        $region51: #{tpu_custom_call.1} parent=27 // pred_region
          _
        $region52: #{tpu_custom_call.1} parent=27 // pred_fallthru
          _
      $region28: #{tpu_custom_call.1} parent=5 // pred_fallthru
        _
      %p1038 = scmp.le.s32.totalorder 2, %s17
      // Predicated region
      $region53: #{tpu_custom_call.1} parent=5 // pred_check
        %p1039 = pneg %p1038
      $region54: #{tpu_custom_call.1} parent=5 // pred_check_branch
        %1041 = sbr.rel (%p1039) target = $region56
      $region55: #{tpu_custom_call.1} parent=5 // pred_region
        %s1042 = ssub.s32 %s17, 2
        // Predicated region
        $region57: #{tpu_custom_call.1} parent=55 // pred_check
          %p1043 = pneg %p93
        $region58: #{tpu_custom_call.1} parent=55 // pred_check_branch
          %1045 = sbr.rel (%p1043) target = $region60
        $region59: #{tpu_custom_call.1} parent=55 // pred_region
          %s1046 = sand.u32 %s78, 1
          %s1047 = scalar_lea.sflag [#allocation5], %s1046
          %s1048 = sand.u32 %s78, 1
          %s1049 = smul.addr %s1048, 64
          %s1050 = scalar_lea.vmem [#allocation8], %s1049
          %1051 = dma.done %s1047, 1024
        $region60: #{tpu_custom_call.1} parent=55 // pred_fallthru
          _
      $region56: #{tpu_custom_call.1} parent=5 // pred_fallthru
        _
    $region6: #{tpu_custom_call.1} parent=1 // loop_footer
      %s21 = sadd.s32 1, %s17
    $region7: #{tpu_custom_call.1} parent=1 // loop_footer_branch
      %16 = sbr.rel target = $region3
    $region8: #{tpu_custom_call.1} parent=1 // loop_exit
      _
    %1052 = vsyncpa [#allocation4], 1
    %s1053 = scalar_lea.sflag [#allocation4], 1
    %1054 = vsyncpa %s1053, 1
    %1055 = vsyncpa [#allocation7], 1
    %1056 = vsyncpa [#allocation5], 1
    %s1057 = scalar_lea.sflag [#allocation5], 1
    %1058 = vsyncpa %s1057, 1

</llo_original>
